<compile_context>
chip_gen: v7x
topology: tpu7x:2x2x1
jax: 0.10.0
libtpu: 0.0.40
codegen_flags: <defaults>
</compile_context>

<pallas_src>
from math import log
from functools import partial

import jax
import jax.numpy as jnp
from jax.experimental import pallas as pl
from jax.experimental.pallas import tpu as pltpu


# ------------------------------ kernels --------------------------------------


def _sin_pe(ps_ref, x_ref, div_ref, *, r, lane_shift):
    """x + sin((pos + seq) * div_term) in f32 for the current (ts, L) block.

    The (S, B, D) input is viewed as (S//r, r*B*D): each kernel row holds r
    consecutive sequence positions (lane-dense stores).  The per-lane sequence
    offset inside a kernel row is lane >> log2(B*D)  (B*D is a power of two
    whenever r > 1).
    """
    i = pl.program_id(0)
    ts, L = x_ref.shape
    row = jax.lax.broadcasted_iota(jnp.int32, (ts, L), 0)
    seq = (i * ts + row) * r
    if r > 1:
        lane = jax.lax.broadcasted_iota(jnp.int32, (ts, L), 1)
        seq = seq + (lane >> lane_shift)          # == lane // (B*D)
    position = (ps_ref[0] + seq).astype(jnp.float32)
    return x_ref[...].astype(jnp.float32) + jnp.sin(position * div_ref[...])


def _pe_sin_kernel(ps_ref, x_ref, div_ref, o_ref, *, r, lane_shift):
    o_ref[...] = _sin_pe(ps_ref, x_ref, div_ref,
                         r=r, lane_shift=lane_shift).astype(o_ref.dtype)


def _pe_sin_dropout_kernel(ps_ref, x_ref, div_ref, u_ref, o_ref, *,
                           r, lane_shift, p, inv_keep):
    y = _sin_pe(ps_ref, x_ref, div_ref, r=r, lane_shift=lane_shift)
    # Single select (review): keep with prob 1-p and scale by 1/(1-p).
    o_ref[...] = jnp.where(u_ref[...] >= p, y * inv_keep, 0.0).astype(o_ref.dtype)


def _pe_slab_kernel(x_ref, pe_ref, o_ref):
    o_ref[...] = (x_ref[...].astype(jnp.float32) + pe_ref[...]).astype(o_ref.dtype)


def _pe_slab_dropout_kernel(x_ref, pe_ref, u_ref, o_ref, *, p, inv_keep):
    y = x_ref[...].astype(jnp.float32) + pe_ref[...]
    o_ref[...] = jnp.where(u_ref[...] >= p, y * inv_keep, 0.0).astype(o_ref.dtype)


# ------------------------------ helpers --------------------------------------


def _tpu_generation():
    try:
        kind = jax.devices()[0].device_kind.lower()
    except Exception:
        return None
    if "v5" in kind:
        return "v5e"
    if "v6" in kind:
        return "v6e"
    if "v7" in kind or "7x" in kind:
        return "v7x"
    return None


def _choose_fold(S, bd, max_lanes=1024):
    """r consecutive sequence rows folded per kernel row so r*bd % 128 == 0."""
    if bd % 128 == 0:
        return 1
    if bd & (bd - 1):                  # need power-of-two bd for the lane shift
        return 1
    r, best = 1, 1
    while (r * 2) * bd <= max_lanes and S % (r * 2) == 0:
        r *= 2
        if (r * bd) % 128 == 0:
            best = r
    return best if (best * bd) % 128 == 0 else 1


def _choose_block_rows(n_rows, row_bytes, itemsize, target_bytes, split_two=False):
    """Rows per block: dtype-aware sublane multiple sized to ~target_bytes."""
    min_rows = max(8, 32 // max(int(itemsize), 1))    # f32->8, bf16->16, int8->32
    if n_rows <= min_rows:
        return n_rows
    rows = (int(target_bytes) // max(int(row_bytes), 1)) // min_rows * min_rows
    rows = max(min_rows, rows)
    if rows >= n_rows:
        # Whole array fits in one block.  On v7x force >= 2 blocks so the
        # "parallel" grid axis can shard across the two TensorCores.
        if split_two and n_rows >= 2 * min_rows:
            half = -(-((n_rows + 1) // 2) // min_rows) * min_rows
            if half < n_rows:
                return half
        return n_rows
    return rows


# ------------------------------ dispatch -------------------------------------


@partial(jax.jit, static_argnames=("ts", "r", "p", "vmem_limit", "donate"))
def _pe_forward(x, pos, div_row, pe_full, unif, *, ts, r, p, vmem_limit, donate):
    S, B, D = x.shape
    bd = B * D
    R, L = S // r, r * bd
    x2d = x.reshape(R, L)                       # lane-dense view
    grid = (pl.cdiv(R, ts),)

    def row_spec():
        return pl.BlockSpec((ts, L), lambda i: (i, 0))

    cparams = pltpu.CompilerParams(
        dimension_semantics=("parallel",),      # shards blocks across v7x's 2 TCs
        vmem_limit_bytes=vmem_limit)

    operands, in_specs = [], []
    if pe_full is None:
        # On-the-fly pe: sin recompute on otherwise-idle VALU/EUP slots; no pe
        # HBM traffic.  pos lives in SMEM so changing it never recompiles.
        scalars = jnp.reshape(jnp.asarray(pos, jnp.int32), (1,))
        operands += [scalars, x2d, div_row]
        in_specs += [pl.BlockSpec(memory_space=pltpu.MemorySpace.SMEM),
                     row_spec(),
                     pl.BlockSpec((1, L), lambda i: (0, 0))]
        lane_shift = max(bd.bit_length() - 1, 0)
        if unif is None:
            kernel = partial(_pe_sin_kernel, r=r, lane_shift=lane_shift)
        else:
            kernel = partial(_pe_sin_dropout_kernel, r=r, lane_shift=lane_shift,
                             p=p, inv_keep=1.0 / (1.0 - p))
        x_index = 1
    else:
        # Precomputed batch-tiled pe slab, DMA'd alongside x (trades ~50% extra
        # read traffic for zero sin work -- wins on high-HBM-BW parts, v7x).
        pe_slab = jax.lax.dynamic_slice_in_dim(
            pe_full, jnp.asarray(pos, jnp.int32), S, axis=0).reshape(R, L)
        operands += [x2d, pe_slab]
        in_specs += [row_spec(), row_spec()]
        if unif is None:
            kernel = _pe_slab_kernel
        else:
            kernel = partial(_pe_slab_dropout_kernel, p=p, inv_keep=1.0 / (1.0 - p))
        x_index = 0

    if unif is not None:
        operands.append(unif)
        in_specs.append(row_spec())

    out2d = pl.pallas_call(
        kernel,
        grid=grid,
        in_specs=in_specs,
        out_specs=pl.BlockSpec((ts, L), lambda i: (i, 0)),
        out_shape=jax.ShapeDtypeStruct((R, L), x.dtype),
        compiler_params=cparams,
        input_output_aliases={x_index: 0} if donate else {},
    )(*operands)
    return out2d.reshape(S, B, D)


# ------------------------------ module wrapper --------------------------------


class PositionalEncodingPallas:
    """Pallas-TPU forward pass of tranad.model.encoding.PositionalEncoding."""

    def __init__(self, d_model: int, dropout: float = 0.1, max_len: int = 5000):
        assert 0.0 <= dropout < 1.0, "dropout p must be in [0, 1)"
        self.p = float(dropout)
        self.d_model = int(d_model)
        self.max_len = int(max_len)
        # Matches torch: div_term = exp(arange(d_model) * (-log(10000)/d_model))
        self.div_term = jnp.exp(
            jnp.arange(d_model, dtype=jnp.float32) * (-log(10000.0) / d_model))
        # pe[s, d] = sin(s * div_term[d])  (sin-only, exactly as in the spec)
        self.pe = jnp.sin(
            jnp.arange(max_len, dtype=jnp.float32)[:, None] * self.div_term)
        self._div_rows = {}   # (B, r) -> (1, r*B*D) per-lane div_term row
        self._pe_tiled = {}   # B -> (max_len, B*D) batch-tiled pe slab (f32)

    def __call__(self, x, pos: int = 0, training: bool = False, key=None,
                 precompute_pe=None, donate_x: bool = False):
        S, B, D = x.shape
        assert D == self.d_model
        bd = B * D
        gen = _tpu_generation()
        if precompute_pe is None:
            precompute_pe = (gen == "v7x")       # DMA pe on v7x, recompute elsewhere

        r = _choose_fold(S, bd)
        R, L = S // r, r * bd
        use_dropout = training and self.p > 0.0

        # Generation-aware block sizing: blocked arrays (incl. output) are
        # double-buffered, so keep 2 * n_blocked * block under the scoped VMEM.
        n_blocked = (3 if precompute_pe else 2) + (1 if use_dropout else 0)
        budget = {"v5e": 12 << 20, "v6e": 24 << 20, "v7x": 20 << 20}.get(gen, 8 << 20)
        target = max(budget // (2 * n_blocked), 1 << 20)
        ts = _choose_block_rows(R, L * x.dtype.itemsize, x.dtype.itemsize, target,
                                split_two=(gen == "v7x"))
        vmem_limit = (32 << 20) if gen in ("v6e", "v7x") else None

        div_row, pe_full = None, None
        if precompute_pe:
            pe_full = self._pe_tiled.get(B)
            if pe_full is None:
                pe_full = jnp.tile(self.pe, (1, B))            # (max_len, B*D)
                self._pe_tiled[B] = pe_full
        else:
            div_row = self._div_rows.get((B, r))
            if div_row is None:
                div_row = jnp.tile(self.div_term, B * r).reshape(1, L)
                self._div_rows[(B, r)] = div_row

        unif = None
        if use_dropout:
            assert key is not None, "training=True requires a jax.random key"
            unif = jax.random.uniform(key, (R, L), dtype=jnp.float32)

        return _pe_forward(x, pos, div_row, pe_full, unif,
                           ts=ts, r=r, p=(self.p if use_dropout else 0.0),
                           vmem_limit=vmem_limit, donate=bool(donate_x))


# ------------------------------ demo / check ----------------------------------

if __name__ == "__main__":
    key = jax.random.PRNGKey(0)
    kx, kd = jax.random.split(key)
    seq_len, batch, d_model = 8, 2, 32
    x = jax.random.normal(kx, (seq_len, batch, d_model), dtype=jnp.float32)

    mod = PositionalEncodingPallas(d_model=d_model, dropout=0.1, max_len=5000)

    def ref_fwd(x, pos):
        return x + mod.pe[pos:pos + x.shape[0]][:, None, :]

    # --- eval mode, pos = 0, generation-default pe path ---
    out = jax.block_until_ready(mod(x, pos=0, training=False))
    assert out.shape == (seq_len, batch, d_model)
    assert jnp.allclose(out, ref_fwd(x, 0), atol=1e-4, rtol=1e-4), \
        float(jnp.max(jnp.abs(out - ref_fwd(x, 0))))

    # --- eval mode, nonzero pos, both pe paths (sin recompute + DMA'd slab) ---
    pos = 3
    for pre in (False, True):
        out_p = jax.block_until_ready(
            mod(x, pos=pos, training=False, precompute_pe=pre))
        assert jnp.allclose(out_p, ref_fwd(x, pos), atol=1e-4, rtol=1e-4), \
            (pre, float(jnp.max(jnp.abs(out_p - ref_fwd(x, pos)))))

    # --- training mode (inverted dropout, mask applied in-kernel) ---
    out_tr = jax.block_until_ready(mod(x, pos=0, training=True, key=kd))
    kept = ref_fwd(x, 0) * (1.0 / (1.0 - mod.p))
    ok = jnp.isclose(out_tr, 0.0, atol=1e-6) | \
         jnp.isclose(out_tr, kept, atol=1e-4, rtol=1e-4)
    assert bool(jnp.all(ok))

    print("KERNEL_OK")
</pallas_src>

<mosaic_0001>
module attributes {stable_mosaic.version = 11 : i64} {
  func.func @_pe_sin_kernel(%arg0: i32, %arg1: memref<1xi32, #tpu.memory_space<smem>>, %arg2: memref<1x512xf32, #tpu.memory_space<vmem>>, %arg3: memref<1x512xf32, #tpu.memory_space<vmem>>, %arg4: memref<1x512xf32, #tpu.memory_space<vmem>>) attributes {dimension_semantics = [#tpu.dimension_semantics<parallel>], iteration_bounds = array<i64: 1>, scalar_prefetch = 0 : i64, scratch_operands = 0 : i64, tpu.core_type = #tpu.core_type<tc>, window_params = [{transform_indices = @transform_0, window_bounds = array<i64: 1>}, {transform_indices = @transform_1, window_bounds = array<i64: 1, 512>}, {pipeline_mode = #tpu.pipeline_mode<synchronous>, transform_indices = @transform_2, window_bounds = array<i64: 1, 512>}, {transform_indices = @transform_3, window_bounds = array<i64: 1, 512>}]} {
    %0 = tpu.iota {dimensions = array<i32: 0>} : vector<1x512xi32>
    %c1_i32 = arith.constant 1 : i32
    %1 = arith.muli %arg0, %c1_i32 : i32
    %2 = vector.broadcast %1 : i32 to vector<1x512xi32>
    %3 = arith.addi %2, %0 : vector<1x512xi32>
    %c8_i32 = arith.constant 8 : i32
    %4 = vector.broadcast %c8_i32 : i32 to vector<1x512xi32>
    %5 = arith.muli %3, %4 : vector<1x512xi32>
    %6 = tpu.iota {dimensions = array<i32: 1>} : vector<1x512xi32>
    %c6_i32 = arith.constant 6 : i32
    %7 = vector.broadcast %c6_i32 : i32 to vector<1x512xi32>
    %8 = arith.shrsi %6, %7 : vector<1x512xi32>
    %9 = arith.addi %5, %8 : vector<1x512xi32>
    %c0 = arith.constant 0 : index
    %10 = memref.load %arg1[%c0] : memref<1xi32, #tpu.memory_space<smem>>
    %11 = vector.broadcast %10 : i32 to vector<1x512xi32>
    %12 = arith.addi %11, %9 : vector<1x512xi32>
    %13 = arith.sitofp %12 : vector<1x512xi32> to vector<1x512xf32>
    %c0_0 = arith.constant 0 : index
    %c0_1 = arith.constant 0 : index
    %14 = vector.load %arg2[%c0_0, %c0_1] : memref<1x512xf32, #tpu.memory_space<vmem>>, vector<1x512xf32>
    %c0_2 = arith.constant 0 : index
    %c0_3 = arith.constant 0 : index
    %15 = vector.load %arg3[%c0_2, %c0_3] : memref<1x512xf32, #tpu.memory_space<vmem>>, vector<1x512xf32>
    %16 = arith.mulf %13, %15 : vector<1x512xf32>
    %17 = math.sin %16 : vector<1x512xf32>
    %18 = arith.addf %14, %17 : vector<1x512xf32>
    %c0_4 = arith.constant 0 : index
    %c0_5 = arith.constant 0 : index
    %19 = vector.load %arg4[%c0_4, %c0_5] : memref<1x512xf32, #tpu.memory_space<vmem>>, vector<1x512xf32>
    tpu.vector_store %arg4[%c0_4, %c0_5], %18 {strides = array<i32>} : memref<1x512xf32, #tpu.memory_space<vmem>>, vector<1x512xf32>,
    return
  }
  func.func @transform_0(%arg0: i32) -> i32 {
    %c0_i32 = arith.constant 0 : i32
    %c0_i32_0 = arith.constant 0 : i32
    return %c0_i32 : i32
  }
  func.func @transform_1(%arg0: i32) -> (i32, i32) {
    %c0_i32 = arith.constant 0 : i32
    %c0_i32_0 = arith.constant 0 : i32
    return %arg0, %c0_i32 : i32, i32
  }
  func.func @transform_2(%arg0: i32) -> (i32, i32) {
    %c0_i32 = arith.constant 0 : i32
    %c0_i32_0 = arith.constant 0 : i32
    %c0_i32_1 = arith.constant 0 : i32
    return %c0_i32, %c0_i32_0 : i32, i32
  }
  func.func @transform_3(%arg0: i32) -> (i32, i32) {
    %c0_i32 = arith.constant 0 : i32
    %c0_i32_0 = arith.constant 0 : i32
    return %arg0, %c0_i32 : i32, i32
  }
}

</mosaic_0001>

<llo_original>
// kernel: _pe_forward.1
$region0: #{_pe_forward.1}
  #allocation0 [shape = 'u32[]', space=smem, size = 0x4, offset = 0x4, fixed_abs, tag = 'smem constant byte address 0x4 - core index']
  #allocation1 [shape = 'u32[144,128]{1,0:T(1,128)}', space=vmem, size = 0x12000, scoped, tag = 'internal scratch']
  #allocation2 [shape = 's32[1]{0:T(128)S(6)}', space=smem, size = 0x200, scoped, tag = 'scoped memory for _pe_forward.1']
  %s0 = inlined_call_operand.<no memory space> [shape: s32[1], index: 0, kind: input, shape index: {}]
  %s1 = inlined_call_operand.vmem [shape: f32[1,512], index: 1, kind: input, shape index: {}]
  %s2 = inlined_call_operand.vmem [shape: f32[1,512], index: 2, kind: input, shape index: {}]
  %s3 = inlined_call_operand.vmem [shape: f32[1,512], index: 3, kind: output, shape index: {}]
  %s4 = sld [smem:[#allocation0]]
  $region22: #{_pe_forward.1} parent=0
    _
  %s6 = ssub.s32 1, %s4
  %s7 = scalar_select 0, %s6, %s4
  %8 = sst [smem:[#allocation2]] %s0
  // Predicated region
  $region2: #{_pe_forward.1} parent=0 // pred_check
    _
  $region3: #{_pe_forward.1} parent=0 // pred_check_branch
    %10 = sbr.rel (0) target = $region5
  $region4: #{_pe_forward.1} parent=0 // pred_region
    _
  $region5: #{_pe_forward.1} parent=0 // pred_fallthru
    _
  // Predicated region
  $region6: #{_pe_forward.1} parent=0 // pred_check
    _
  $region7: #{_pe_forward.1} parent=0 // pred_check_branch
    %12 = sbr.rel (0) target = $region9
  $region8: #{_pe_forward.1} parent=0 // pred_region
    _
  $region9: #{_pe_forward.1} parent=0 // pred_fallthru
    _
  // Predicated region
  $region10: #{_pe_forward.1} parent=0 // pred_check
    _
  $region11: #{_pe_forward.1} parent=0 // pred_check_branch
    %14 = sbr.rel (0) target = $region13
  $region12: #{_pe_forward.1} parent=0 // pred_region
    _
  $region13: #{_pe_forward.1} parent=0 // pred_fallthru
    _
  %v15 = vlaneseq
  %v16 = vshrl.u32 %v15, 7
  %v17 = vstv 0
  %v18 = vadd.s32 %v17, %v16
  %v19 = vmul.u32 %v18, 8
  %v20 = vlaneseq
  %v21 = vand.u32 %v20, 127
  %v22 = vadd.s32 %v21, 128
  %v23 = vadd.s32 %v21, 256
  %v24 = vadd.s32 %v21, 384
  %v25 = vshra.s32 %v21, 6
  %v26 = vshra.s32 %v22, 6
  %v27 = vshra.s32 %v23, 6
  %v28 = vshra.s32 %v24, 6
  %v29 = vadd.s32 %v19, %v25
  %v30 = vadd.s32 %v19, %v26
  %v31 = vadd.s32 %v19, %v27
  %v32 = vadd.s32 %v19, %v28
  %s33 = sld [smem:[#allocation2]]
  %v34 = vstv %s33
  %v35 = vadd.s32 %v34, %v29
  %v36 = vadd.s32 %v34, %v30
  %v37 = vadd.s32 %v34, %v31
  %v38 = vadd.s32 %v34, %v32
  %v39 = vcvt.s32.f32 %v35
  %v40 = vcvt.s32.f32 %v36
  %v41 = vcvt.s32.f32 %v37
  %v42 = vcvt.s32.f32 %v38
  %v43 = vld [vmem:[%s1] sm:$0xf]
  %v44 = vld [vmem:[%s2] sm:$0xf]
  %v46 = vlaneseq
  %v47 = vshrl.u32 %v46, 7
  %v48 = vsub.s32 0, %v47
  %v49 = vrot.slane %v44, %v48
  %v50 = vlaneseq
  %v51 = vshrl.u32 %v50, 7
  %v52 = vsub.s32 1, %v51
  %v53 = vrot.slane %v44, %v52
  %v54 = vlaneseq
  %v55 = vshrl.u32 %v54, 7
  %v56 = vsub.s32 2, %v55
  %v57 = vrot.slane %v44, %v56
  %v58 = vlaneseq
  %v59 = vshrl.u32 %v58, 7
  %v60 = vsub.s32 3, %v59
  %v61 = vrot.slane %v44, %v60
  %v66 = vmul.f32 %v39, %v49
  %v67 = vmul.f32 %v40, %v53
  %v68 = vmul.f32 %v41, %v57
  %v69 = vmul.f32 %v42, %v61
  %v70 = vand.u32 2147483647, %v66
  %vm71 = vcmp.le.f32.partialorder %v70, 0.7853982
  %vm72 = vcmp.lt.s32.totalorder %v66, 0
  %v73 = vand.u32 %v66, 2139095040
  %v74 = vshrl.u32 %v73, 23
  %v75 = vsub.s32 %v74, 127
  %v76 = vand.u32 2147483647, %v66
  %v77 = vand.u32 %v76, 8388607
  %v78 = vor.u32 %v77, 8388608
  %v79 = vsub.s32 0, %v78
  %v80 = vadd.s32 %v75, 1
  %vm81 = vcmp.gt.s32.totalorder %v80, 0
  %v82 = vsel %vm81, %v80, 0
  %v83 = vshrl.u32 %v82, 5
  %v84 = vand.u32 %v82, 31
  %v85 = vsub.s32 32, %v84
  %v86 = vshrl.u32 683565275, %v85
  %v87 = vshll.u32 683565275, %v84
  %v88 = vshrl.u32 2475754826, %v85
  %v89 = vor.u32 %v87, %v88
  %v90 = vshll.u32 2475754826, %v84
  %v91 = vshrl.u32 2131351028, %v85
  %v92 = vor.u32 %v90, %v91
  %v93 = vshll.u32 2131351028, %v84
  %v94 = vshrl.u32 2102212464, %v85
  %v95 = vor.u32 %v93, %v94
  %v96 = vshll.u32 2102212464, %v84
  %v97 = vshrl.u32 920167782, %v85
  %v98 = vor.u32 %v96, %v97
  %v99 = vshll.u32 920167782, %v84
  %v100 = vshrl.u32 1326507024, %v85
  %v101 = vor.u32 %v99, %v100
  %vm102 = vcmp.lt.s32.totalorder %v83, 1
  %vm103 = vcmp.lt.s32.totalorder %v83, 2
  %vm104 = vcmp.lt.s32.totalorder %v83, 3
  %vm105 = vcmp.lt.s32.totalorder %v83, 4
  %v106 = vsel %vm102, %v86, %v89
  %v107 = vsel %vm105, %v95, 2102212464
  %v108 = vsel %vm104, %v92, %v107
  %v109 = vsel %vm103, %v106, %v108
  %v110 = vsel %vm102, %v89, %v92
  %v111 = vsel %vm105, %v98, 920167782
  %v112 = vsel %vm104, %v95, %v111
  %v113 = vsel %vm103, %v110, %v112
  %v114 = vsel %vm102, %v92, %v95
  %v115 = vsel %vm105, %v101, 1326507024
  %v116 = vsel %vm104, %v98, %v115
  %v117 = vsel %vm103, %v114, %v116
  %v118 = vshll.u32 %v78, 8
  %v119 = vmul.u32.u64.compose %v118, %v117
  %v120 = vextract.low.u32 %v119
  %v121 = vextract.high.u32 %v119
  %v122 = vmul.u32.u64.compose %v118, %v113
  %v123 = vextract.low.u32 %v122
  %v124 = vextract.high.u32 %v122
  %v125 = vmul.u32 %v118, %v109
  %v126 = vadd.s32 %v121, %v123
  %vm127 = vc.u32 %v121, %v123
  %v128 = vadd.s32 %v124, 1
  %v129 = vsel %vm127, %v128, %v124
  %v130 = vadd.s32 %v125, %v129
  %v131 = vadd.s32 %v130, 536870912
  %v132 = vshrl.u32 %v131, 30
  %v133 = vshll.u32 %v132, 30
  %v134 = vsub.s32 %v130, %v133
  %vm135 = vcmp.lt.s32.totalorder %v134, 0
  %v136 = vsub.s32 0, %v134
  %v137 = vsel %vm135, %v136, %v134
  %v138 = vclz %v137
  %v139 = vsub.s32 %v138, 2
  %vm140 = vcmp.gt.s32.totalorder 0, %v139
  %v141 = vsel %vm140, 0, %v139
  %v142 = vsub.s32 32, %v141
  %v143 = vshll.u32 %v134, %v141
  %v144 = vshrl.u32 %v126, %v142
  %v145 = vor.u32 %v143, %v144
  %v146 = vsub.s32 4294967266, %v141
  %v147 = vadd.s32 %v146, 127
  %v148 = vshll.u32 %v147, 23
  %v149 = vor.u32 4788187, %v148
  %v150 = vand.u32 2147483647, %v149
  %v152 = vcvt.s32.f32 %v145
  %v153 = vmul.f32 %v152, %v150
  %v154 = vxor.u32 %v153, 2147483648
  %v155 = vsel %vm72, %v154, %v153
  %v156 = vsub.s32 4, %v132
  %v157 = vsel %vm72, %v156, %v132
  %v158 = vsel %vm71, %v66, %v155
  %v159 = vsel %vm71, 0, %v157
  %v160 = vcosq.f32.pop %v158
  %v161 = vsinq.f32.pop %v158
  %vm162 = vweird.f32 %v66
  %v163 = vadd.s32 %v159, 3
  %v164 = vand.u32 %v163, 3
  %vm165 = vcmp.lt.s32.totalorder %v164, 2
  %vm166 = vcmp.eq.s32.totalorder %v164, 0
  %v167 = vxor.u32 %v161, 2147483648
  %v168 = vsel %vm166, %v160, %v167
  %vm169 = vcmp.eq.s32.totalorder %v164, 2
  %v170 = vxor.u32 %v160, 2147483648
  %v171 = vsel %vm169, %v170, %v161
  %v172 = vsel %vm165, %v168, %v171
  %v173 = vsel %vm162, nan, %v172
  %v174 = vand.u32 2147483647, %v67
  %vm175 = vcmp.le.f32.partialorder %v174, 0.7853982
  %vm176 = vcmp.lt.s32.totalorder %v67, 0
  %v177 = vand.u32 %v67, 2139095040
  %v178 = vshrl.u32 %v177, 23
  %v179 = vsub.s32 %v178, 127
  %v180 = vand.u32 2147483647, %v67
  %v181 = vand.u32 %v180, 8388607
  %v182 = vor.u32 %v181, 8388608
  %v183 = vsub.s32 0, %v182
  %v184 = vadd.s32 %v179, 1
  %vm185 = vcmp.gt.s32.totalorder %v184, 0
  %v186 = vsel %vm185, %v184, 0
  %v187 = vshrl.u32 %v186, 5
  %v188 = vand.u32 %v186, 31
  %v189 = vsub.s32 32, %v188
  %v190 = vshrl.u32 683565275, %v189
  %v191 = vshll.u32 683565275, %v188
  %v192 = vshrl.u32 2475754826, %v189
  %v193 = vor.u32 %v191, %v192
  %v194 = vshll.u32 2475754826, %v188
  %v195 = vshrl.u32 2131351028, %v189
  %v196 = vor.u32 %v194, %v195
  %v197 = vshll.u32 2131351028, %v188
  %v198 = vshrl.u32 2102212464, %v189
  %v199 = vor.u32 %v197, %v198
  %v200 = vshll.u32 2102212464, %v188
  %v201 = vshrl.u32 920167782, %v189
  %v202 = vor.u32 %v200, %v201
  %v203 = vshll.u32 920167782, %v188
  %v204 = vshrl.u32 1326507024, %v189
  %v205 = vor.u32 %v203, %v204
  %vm206 = vcmp.lt.s32.totalorder %v187, 1
  %vm207 = vcmp.lt.s32.totalorder %v187, 2
  %vm208 = vcmp.lt.s32.totalorder %v187, 3
  %vm209 = vcmp.lt.s32.totalorder %v187, 4
  %v210 = vsel %vm206, %v190, %v193
  %v211 = vsel %vm209, %v199, 2102212464
  %v212 = vsel %vm208, %v196, %v211
  %v213 = vsel %vm207, %v210, %v212
  %v214 = vsel %vm206, %v193, %v196
  %v215 = vsel %vm209, %v202, 920167782
  %v216 = vsel %vm208, %v199, %v215
  %v217 = vsel %vm207, %v214, %v216
  %v218 = vsel %vm206, %v196, %v199
  %v219 = vsel %vm209, %v205, 1326507024
  %v220 = vsel %vm208, %v202, %v219
  %v221 = vsel %vm207, %v218, %v220
  %v222 = vshll.u32 %v182, 8
  %v223 = vmul.u32.u64.compose %v222, %v221
  %v224 = vextract.low.u32 %v223
  %v225 = vextract.high.u32 %v223
  %v226 = vmul.u32.u64.compose %v222, %v217
  %v227 = vextract.low.u32 %v226
  %v228 = vextract.high.u32 %v226
  %v229 = vmul.u32 %v222, %v213
  %v230 = vadd.s32 %v225, %v227
  %vm231 = vc.u32 %v225, %v227
  %v232 = vadd.s32 %v228, 1
  %v233 = vsel %vm231, %v232, %v228
  %v234 = vadd.s32 %v229, %v233
  %v235 = vadd.s32 %v234, 536870912
  %v236 = vshrl.u32 %v235, 30
  %v237 = vshll.u32 %v236, 30
  %v238 = vsub.s32 %v234, %v237
  %vm239 = vcmp.lt.s32.totalorder %v238, 0
  %v240 = vsub.s32 0, %v238
  %v241 = vsel %vm239, %v240, %v238
  %v242 = vclz %v241
  %v243 = vsub.s32 %v242, 2
  %vm244 = vcmp.gt.s32.totalorder 0, %v243
  %v245 = vsel %vm244, 0, %v243
  %v246 = vsub.s32 32, %v245
  %v247 = vshll.u32 %v238, %v245
  %v248 = vshrl.u32 %v230, %v246
  %v249 = vor.u32 %v247, %v248
  %v250 = vsub.s32 4294967266, %v245
  %v251 = vadd.s32 %v250, 127
  %v252 = vshll.u32 %v251, 23
  %v253 = vor.u32 4788187, %v252
  %v254 = vand.u32 2147483647, %v253
  %v256 = vcvt.s32.f32 %v249
  %v257 = vmul.f32 %v256, %v254
  %v258 = vxor.u32 %v257, 2147483648
  %v259 = vsel %vm176, %v258, %v257
  %v260 = vsub.s32 4, %v236
  %v261 = vsel %vm176, %v260, %v236
  %v262 = vsel %vm175, %v67, %v259
  %v263 = vsel %vm175, 0, %v261
  %v264 = vcosq.f32.pop %v262
  %v265 = vsinq.f32.pop %v262
  %vm266 = vweird.f32 %v67
  %v267 = vadd.s32 %v263, 3
  %v268 = vand.u32 %v267, 3
  %vm269 = vcmp.lt.s32.totalorder %v268, 2
  %vm270 = vcmp.eq.s32.totalorder %v268, 0
  %v271 = vxor.u32 %v265, 2147483648
  %v272 = vsel %vm270, %v264, %v271
  %vm273 = vcmp.eq.s32.totalorder %v268, 2
  %v274 = vxor.u32 %v264, 2147483648
  %v275 = vsel %vm273, %v274, %v265
  %v276 = vsel %vm269, %v272, %v275
  %v277 = vsel %vm266, nan, %v276
  %v278 = vand.u32 2147483647, %v68
  %vm279 = vcmp.le.f32.partialorder %v278, 0.7853982
  %vm280 = vcmp.lt.s32.totalorder %v68, 0
  %v281 = vand.u32 %v68, 2139095040
  %v282 = vshrl.u32 %v281, 23
  %v283 = vsub.s32 %v282, 127
  %v284 = vand.u32 2147483647, %v68
  %v285 = vand.u32 %v284, 8388607
  %v286 = vor.u32 %v285, 8388608
  %v287 = vsub.s32 0, %v286
  %v288 = vadd.s32 %v283, 1
  %vm289 = vcmp.gt.s32.totalorder %v288, 0
  %v290 = vsel %vm289, %v288, 0
  %v291 = vshrl.u32 %v290, 5
  %v292 = vand.u32 %v290, 31
  %v293 = vsub.s32 32, %v292
  %v294 = vshrl.u32 683565275, %v293
  %v295 = vshll.u32 683565275, %v292
  %v296 = vshrl.u32 2475754826, %v293
  %v297 = vor.u32 %v295, %v296
  %v298 = vshll.u32 2475754826, %v292
  %v299 = vshrl.u32 2131351028, %v293
  %v300 = vor.u32 %v298, %v299
  %v301 = vshll.u32 2131351028, %v292
  %v302 = vshrl.u32 2102212464, %v293
  %v303 = vor.u32 %v301, %v302
  %v304 = vshll.u32 2102212464, %v292
  %v305 = vshrl.u32 920167782, %v293
  %v306 = vor.u32 %v304, %v305
  %v307 = vshll.u32 920167782, %v292
  %v308 = vshrl.u32 1326507024, %v293
  %v309 = vor.u32 %v307, %v308
  %vm310 = vcmp.lt.s32.totalorder %v291, 1
  %vm311 = vcmp.lt.s32.totalorder %v291, 2
  %vm312 = vcmp.lt.s32.totalorder %v291, 3
  %vm313 = vcmp.lt.s32.totalorder %v291, 4
  %v314 = vsel %vm310, %v294, %v297
  %v315 = vsel %vm313, %v303, 2102212464
  %v316 = vsel %vm312, %v300, %v315
  %v317 = vsel %vm311, %v314, %v316
  %v318 = vsel %vm310, %v297, %v300
  %v319 = vsel %vm313, %v306, 920167782
  %v320 = vsel %vm312, %v303, %v319
  %v321 = vsel %vm311, %v318, %v320
  %v322 = vsel %vm310, %v300, %v303
  %v323 = vsel %vm313, %v309, 1326507024
  %v324 = vsel %vm312, %v306, %v323
  %v325 = vsel %vm311, %v322, %v324
  %v326 = vshll.u32 %v286, 8
  %v327 = vmul.u32.u64.compose %v326, %v325
  %v328 = vextract.low.u32 %v327
  %v329 = vextract.high.u32 %v327
  %v330 = vmul.u32.u64.compose %v326, %v321
  %v331 = vextract.low.u32 %v330
  %v332 = vextract.high.u32 %v330
  %v333 = vmul.u32 %v326, %v317
  %v334 = vadd.s32 %v329, %v331
  %vm335 = vc.u32 %v329, %v331
  %v336 = vadd.s32 %v332, 1
  %v337 = vsel %vm335, %v336, %v332
  %v338 = vadd.s32 %v333, %v337
  %v339 = vadd.s32 %v338, 536870912
  %v340 = vshrl.u32 %v339, 30
  %v341 = vshll.u32 %v340, 30
  %v342 = vsub.s32 %v338, %v341
  %vm343 = vcmp.lt.s32.totalorder %v342, 0
  %v344 = vsub.s32 0, %v342
  %v345 = vsel %vm343, %v344, %v342
  %v346 = vclz %v345
  %v347 = vsub.s32 %v346, 2
  %vm348 = vcmp.gt.s32.totalorder 0, %v347
  %v349 = vsel %vm348, 0, %v347
  %v350 = vsub.s32 32, %v349
  %v351 = vshll.u32 %v342, %v349
  %v352 = vshrl.u32 %v334, %v350
  %v353 = vor.u32 %v351, %v352
  %v354 = vsub.s32 4294967266, %v349
  %v355 = vadd.s32 %v354, 127
  %v356 = vshll.u32 %v355, 23
  %v357 = vor.u32 4788187, %v356
  %v358 = vand.u32 2147483647, %v357
  %v360 = vcvt.s32.f32 %v353
  %v361 = vmul.f32 %v360, %v358
  %v362 = vxor.u32 %v361, 2147483648
  %v363 = vsel %vm280, %v362, %v361
  %v364 = vsub.s32 4, %v340
  %v365 = vsel %vm280, %v364, %v340
  %v366 = vsel %vm279, %v68, %v363
  %v367 = vsel %vm279, 0, %v365
  %v368 = vcosq.f32.pop %v366
  %v369 = vsinq.f32.pop %v366
  %vm370 = vweird.f32 %v68
  %v371 = vadd.s32 %v367, 3
  %v372 = vand.u32 %v371, 3
  %vm373 = vcmp.lt.s32.totalorder %v372, 2
  %vm374 = vcmp.eq.s32.totalorder %v372, 0
  %v375 = vxor.u32 %v369, 2147483648
  %v376 = vsel %vm374, %v368, %v375
  %vm377 = vcmp.eq.s32.totalorder %v372, 2
  %v378 = vxor.u32 %v368, 2147483648
  %v379 = vsel %vm377, %v378, %v369
  %v380 = vsel %vm373, %v376, %v379
  %v381 = vsel %vm370, nan, %v380
  %v382 = vand.u32 2147483647, %v69
  %vm383 = vcmp.le.f32.partialorder %v382, 0.7853982
  %vm384 = vcmp.lt.s32.totalorder %v69, 0
  %v385 = vand.u32 %v69, 2139095040
  %v386 = vshrl.u32 %v385, 23
  %v387 = vsub.s32 %v386, 127
  %v388 = vand.u32 2147483647, %v69
  %v389 = vand.u32 %v388, 8388607
  %v390 = vor.u32 %v389, 8388608
  %v391 = vsub.s32 0, %v390
  %v392 = vadd.s32 %v387, 1
  %vm393 = vcmp.gt.s32.totalorder %v392, 0
  %v394 = vsel %vm393, %v392, 0
  %v395 = vshrl.u32 %v394, 5
  %v396 = vand.u32 %v394, 31
  %v397 = vsub.s32 32, %v396
  %v398 = vshrl.u32 683565275, %v397
  %v399 = vshll.u32 683565275, %v396
  %v400 = vshrl.u32 2475754826, %v397
  %v401 = vor.u32 %v399, %v400
  %v402 = vshll.u32 2475754826, %v396
  %v403 = vshrl.u32 2131351028, %v397
  %v404 = vor.u32 %v402, %v403
  %v405 = vshll.u32 2131351028, %v396
  %v406 = vshrl.u32 2102212464, %v397
  %v407 = vor.u32 %v405, %v406
  %v408 = vshll.u32 2102212464, %v396
  %v409 = vshrl.u32 920167782, %v397
  %v410 = vor.u32 %v408, %v409
  %v411 = vshll.u32 920167782, %v396
  %v412 = vshrl.u32 1326507024, %v397
  %v413 = vor.u32 %v411, %v412
  %vm414 = vcmp.lt.s32.totalorder %v395, 1
  %vm415 = vcmp.lt.s32.totalorder %v395, 2
  %vm416 = vcmp.lt.s32.totalorder %v395, 3
  %vm417 = vcmp.lt.s32.totalorder %v395, 4
  %v418 = vsel %vm414, %v398, %v401
  %v419 = vsel %vm417, %v407, 2102212464
  %v420 = vsel %vm416, %v404, %v419
  %v421 = vsel %vm415, %v418, %v420
  %v422 = vsel %vm414, %v401, %v404
  %v423 = vsel %vm417, %v410, 920167782
  %v424 = vsel %vm416, %v407, %v423
  %v425 = vsel %vm415, %v422, %v424
  %v426 = vsel %vm414, %v404, %v407
  %v427 = vsel %vm417, %v413, 1326507024
  %v428 = vsel %vm416, %v410, %v427
  %v429 = vsel %vm415, %v426, %v428
  %v430 = vshll.u32 %v390, 8
  %v431 = vmul.u32.u64.compose %v430, %v429
  %v432 = vextract.low.u32 %v431
  %v433 = vextract.high.u32 %v431
  %v434 = vmul.u32.u64.compose %v430, %v425
  %v435 = vextract.low.u32 %v434
  %v436 = vextract.high.u32 %v434
  %v437 = vmul.u32 %v430, %v421
  %v438 = vadd.s32 %v433, %v435
  %vm439 = vc.u32 %v433, %v435
  %v440 = vadd.s32 %v436, 1
  %v441 = vsel %vm439, %v440, %v436
  %v442 = vadd.s32 %v437, %v441
  %v443 = vadd.s32 %v442, 536870912
  %v444 = vshrl.u32 %v443, 30
  %v445 = vshll.u32 %v444, 30
  %v446 = vsub.s32 %v442, %v445
  %vm447 = vcmp.lt.s32.totalorder %v446, 0
  %v448 = vsub.s32 0, %v446
  %v449 = vsel %vm447, %v448, %v446
  %v450 = vclz %v449
  %v451 = vsub.s32 %v450, 2
  %vm452 = vcmp.gt.s32.totalorder 0, %v451
  %v453 = vsel %vm452, 0, %v451
  %v454 = vsub.s32 32, %v453
  %v455 = vshll.u32 %v446, %v453
  %v456 = vshrl.u32 %v438, %v454
  %v457 = vor.u32 %v455, %v456
  %v458 = vsub.s32 4294967266, %v453
  %v459 = vadd.s32 %v458, 127
  %v460 = vshll.u32 %v459, 23
  %v461 = vor.u32 4788187, %v460
  %v462 = vand.u32 2147483647, %v461
  %v464 = vcvt.s32.f32 %v457
  %v465 = vmul.f32 %v464, %v462
  %v466 = vxor.u32 %v465, 2147483648
  %v467 = vsel %vm384, %v466, %v465
  %v468 = vsub.s32 4, %v444
  %v469 = vsel %vm384, %v468, %v444
  %v470 = vsel %vm383, %v69, %v467
  %v471 = vsel %vm383, 0, %v469
  %v472 = vcosq.f32.pop %v470
  %v473 = vsinq.f32.pop %v470
  %vm474 = vweird.f32 %v69
  %v475 = vadd.s32 %v471, 3
  %v476 = vand.u32 %v475, 3
  %vm477 = vcmp.lt.s32.totalorder %v476, 2
  %vm478 = vcmp.eq.s32.totalorder %v476, 0
  %v479 = vxor.u32 %v473, 2147483648
  %v480 = vsel %vm478, %v472, %v479
  %vm481 = vcmp.eq.s32.totalorder %v476, 2
  %v482 = vxor.u32 %v472, 2147483648
  %v483 = vsel %vm481, %v482, %v473
  %v484 = vsel %vm477, %v480, %v483
  %v485 = vsel %vm474, nan, %v484
  %v490 = vcombine.low %v173, %v277
  %v491 = vcombine.low %v381, %v485
  %v493 = vunpack.c.l.s4 1966171168
  %v494 = vunpack.c.0.s8 %v493
  %v495 = vlaneseq
  %v496 = vshrl.u32 %v495, 7
  %v497 = vsub.s32 %v494, %v496
  %v498 = vrot.slane %v490, %v497
  %v500 = vunpack.c.l.s4 1966171168
  %v501 = vunpack.c.0.s8 %v500
  %v502 = vlaneseq
  %v503 = vshrl.u32 %v502, 7
  %v504 = vsub.s32 %v501, %v503
  %v505 = vrot.slane %v491, %v504
  %v506 = vcombine.low %v498, %v505
  %v508 = vunpack.c.l.s4 1966171168
  %v509 = vunpack.c.0.s8 %v508
  %v510 = vlaneseq
  %v511 = vshrl.u32 %v510, 7
  %v512 = vsub.s32 %v509, %v511
  %v513 = vrot.slane %v506, %v512
  %v515 = vadd.f32 %v43, %v513
  %v516 = vlaneseq
  %vm517 = vcmp.ge.s32.totalorder %v516, 0
  %vm518 = vcmp.lt.s32.totalorder %v516, 512
  %vm519 = vmand %vm517, %vm518
  %520 = vst.msk [vmem:[%s3] sm:$0xf] %vm519, %v515
  // Predicated region
  $region14: #{_pe_forward.1} parent=0 // pred_check
    _
  $region15: #{_pe_forward.1} parent=0 // pred_check_branch
    %522 = sbr.rel (0) target = $region17
  $region16: #{_pe_forward.1} parent=0 // pred_region
    _
  $region17: #{_pe_forward.1} parent=0 // pred_fallthru
    _
  // Predicated region
  $region18: #{_pe_forward.1} parent=0 // pred_check
    _
  $region19: #{_pe_forward.1} parent=0 // pred_check_branch
    %524 = sbr.rel (0) target = $region21
  $region20: #{_pe_forward.1} parent=0 // pred_region
    _
  $region21: #{_pe_forward.1} parent=0 // pred_fallthru
    _

</llo_original>
